<compile_context>
chip_gen: v5e
topology: v5e:2x2
jax: 0.10.0
libtpu: 0.0.40
codegen_flags: <defaults>
</compile_context>

<pallas_src>
import jax
import jax.numpy as jnp
from jax import lax
from jax.experimental import pallas as pl
from jax.experimental.pallas import tpu as pltpu


IN_FEATURES = 64
HIDDEN = 32
OUT_FEATURES = 1
LEAKY_SLOPE = 0.2


def _discriminator_kernel(x_ref, w1_ref, b1_ref, w2_ref, b2_ref, o_ref):
    # x_ref:  [TILE_B, 64]   w1_ref: [64, 32]   b1_ref: [1, 32]
    # w2_ref: [1, 32]        b2_ref: [1, 1]     o_ref:  [1, 1, TILE_B]
    x = x_ref[...]

    # Linear(64, 32) on the MXU, f32 accumulation (x / w1 may be f32 or bf16).
    h = jnp.dot(x, w1_ref[...], preferred_element_type=jnp.float32)
    h = h + b1_ref[...]

    # LeakyReLU(0.2): single vmax (slope < 1) instead of compare+select.
    h = jnp.maximum(h, LEAKY_SLOPE * h)

    # Linear(32, 1), lane-dense: contract the 32-feature axes of w2 [1, 32]
    # and h [TILE_B, 32] on the MXU -> [1, TILE_B] row (batch on the lane axis).
    out_row = lax.dot_general(
        w2_ref[...], h,
        dimension_numbers=(((1,), (1,)), ((), ())),
        preferred_element_type=jnp.float32)
    out_row = out_row + b2_ref[...]                       # [1, TILE_B]

    o_ref[...] = out_row[None].astype(o_ref.dtype)        # [1, 1, TILE_B]


def _round_up(x, m):
    return ((x + m - 1) // m) * m


def _pick_batch_tile(batch, tile_b):
    """Batch tile: multiple of 128 (lane-dense output), never exceeding batch."""
    if batch <= 128:
        return batch                               # single full block
    tile = min(_round_up(tile_b, 128), (batch // 128) * 128)
    # v7x megacore: keep >= 2 grid steps for non-trivial batches so the
    # "parallel" batch axis can be split across both TensorCores.
    if batch > 256 and pl.cdiv(batch, tile) < 2:
        tile = max(128, _round_up(pl.cdiv(batch, 2), 128))
    return tile


def discriminator_server_forward(latent, w1, b1, w2, b2, *, tile_b=16384):
    """latent: [B, 64] -> validity: [B, 1] float32.

    w1: [64, 32] (= torch W1.T), b1: [32], w2: [32, 1] (= torch W2.T), b2: [1].
    """
    B = latent.shape[0]
    assert latent.shape[1] == IN_FEATURES

    # Honour caller-supplied bf16 latents; never downcast f32 in the wrapper
    # (the astype would be an extra full HBM pass over x -> net regression).
    if latent.dtype not in (jnp.float32, jnp.bfloat16):
        latent = latent.astype(jnp.float32)
    x_in = latent
    w1_in = w1 if w1.dtype == x_in.dtype else w1.astype(x_in.dtype)   # tiny

    b1_2d = b1.reshape(1, HIDDEN).astype(jnp.float32)
    w2_row = w2.reshape(1, HIDDEN).astype(jnp.float32)     # [32, 1] -> [1, 32]
    b2_2d = b2.reshape(1, OUT_FEATURES).astype(jnp.float32)

    tile = _pick_batch_tile(B, tile_b)
    num_tiles = pl.cdiv(B, tile)

    # Explicit VMEM budget: double-buffered x tile + lane-dense out tile
    # (+ slack).  Keeps very large tiles safe under v5e's 16 MiB scoped
    # default while staying far below v7x's 64 MiB physical VMEM.
    itemsize = jnp.dtype(x_in.dtype).itemsize
    vmem_need = 2 * (tile * IN_FEATURES * itemsize + tile * 4) + (2 << 20)
    vmem_limit = int(max(vmem_need, 16 << 20))

    out = pl.pallas_call(
        _discriminator_kernel,
        out_shape=jax.ShapeDtypeStruct((num_tiles, 1, tile), jnp.float32),
        grid_spec=pltpu.PrefetchScalarGridSpec(
            num_scalar_prefetch=0,
            grid=(num_tiles,),
            in_specs=[
                pl.BlockSpec((tile, IN_FEATURES), lambda i: (i, 0)),
                pl.BlockSpec((IN_FEATURES, HIDDEN), lambda i: (0, 0)),
                pl.BlockSpec((1, HIDDEN), lambda i: (0, 0)),
                pl.BlockSpec((1, HIDDEN), lambda i: (0, 0)),
                pl.BlockSpec((1, OUT_FEATURES), lambda i: (0, 0)),
            ],
            out_specs=pl.BlockSpec((1, 1, tile), lambda i: (i, 0, 0)),
        ),
        compiler_params=pltpu.CompilerParams(
            dimension_semantics=("parallel",),
            vmem_limit_bytes=vmem_limit,
        ),
    )(x_in, w1_in, b1_2d, w2_row, b2_2d)

    # (num_tiles, 1, tile) -> (num_tiles*tile, 1) is a free reshape; drop the
    # garbage rows produced by the partial tail block (never reduced anywhere).
    return out.reshape(num_tiles * tile, OUT_FEATURES)[:B]


def _init_params(key):
    """Deterministic init mimicking torch.nn.Linear default (uniform +/- 1/sqrt(fan_in))."""
    k1, k2, k3, k4 = jax.random.split(key, 4)
    bound1 = 1.0 / jnp.sqrt(IN_FEATURES)
    bound2 = 1.0 / jnp.sqrt(HIDDEN)
    w1 = jax.random.uniform(k1, (IN_FEATURES, HIDDEN), jnp.float32, -bound1, bound1)
    b1 = jax.random.uniform(k2, (HIDDEN,), jnp.float32, -bound1, bound1)
    w2 = jax.random.uniform(k3, (HIDDEN, OUT_FEATURES), jnp.float32, -bound2, bound2)
    b2 = jax.random.uniform(k4, (OUT_FEATURES,), jnp.float32, -bound2, bound2)
    return w1, b1, w2, b2


def _reference_forward(latent, w1, b1, w2, b2):
    h = latent.astype(jnp.float32) @ w1.astype(jnp.float32) + b1
    h = jnp.where(h >= 0.0, h, LEAKY_SLOPE * h)
    return h @ w2 + b2


if __name__ == "__main__":
    key = jax.random.PRNGKey(0)
    k_x, k_x2, k_p = jax.random.split(key, 3)

    w1, b1, w2, b2 = _init_params(k_p)

    # Small, module-consistent case: batch=8, latent dim 64 (single full block).
    B = 8
    latent = jax.random.normal(k_x, (B, IN_FEATURES), jnp.float32)
    validity = jax.block_until_ready(
        discriminator_server_forward(latent, w1, b1, w2, b2))
    expected = _reference_forward(latent, w1, b1, w2, b2)
    assert validity.shape == (B, OUT_FEATURES)
    assert jnp.allclose(validity, expected, atol=1e-5, rtol=1e-5)

    # Multi-tile path with a partial tail block (B not a multiple of the tile),
    # exercising the no-pad boundary handling.
    B2 = 300
    latent2 = jax.random.normal(k_x2, (B2, IN_FEATURES), jnp.float32)
    validity2 = jax.block_until_ready(
        discriminator_server_forward(latent2, w1, b1, w2, b2, tile_b=128))
    expected2 = _reference_forward(latent2, w1, b1, w2, b2)
    assert validity2.shape == (B2, OUT_FEATURES)
    assert jnp.allclose(validity2, expected2, atol=1e-5, rtol=1e-5)

    # Caller-supplied bf16 latents (halved x HBM traffic, f32 accumulation).
    validity_bf16 = jax.block_until_ready(
        discriminator_server_forward(latent2.astype(jnp.bfloat16),
                                     w1, b1, w2, b2, tile_b=128))
    assert jnp.allclose(validity_bf16, expected2, atol=1e-1, rtol=1e-1)

    print("KERNEL_OK")
</pallas_src>

<mosaic_0001>
module attributes {stable_mosaic.version = 11 : i64} {
  func.func @_discriminator_kernel(%arg0: i32, %arg1: memref<8x64xf32, #tpu.memory_space<vmem>>, %arg2: memref<64x32xf32, #tpu.memory_space<vmem>>, %arg3: memref<1x32xf32, #tpu.memory_space<vmem>>, %arg4: memref<1x32xf32, #tpu.memory_space<vmem>>, %arg5: memref<1x1xf32, #tpu.memory_space<vmem>>, %arg6: memref<1x1x8xf32, #tpu.memory_space<vmem>>) attributes {dimension_semantics = [#tpu.dimension_semantics<parallel>], iteration_bounds = array<i64: 1>, scalar_prefetch = 0 : i64, scratch_operands = 0 : i64, tpu.core_type = #tpu.core_type<tc>, window_params = [{transform_indices = @transform_0, window_bounds = array<i64: 8, 64>}, {pipeline_mode = #tpu.pipeline_mode<synchronous>, transform_indices = @transform_1, window_bounds = array<i64: 64, 32>}, {pipeline_mode = #tpu.pipeline_mode<synchronous>, transform_indices = @transform_2, window_bounds = array<i64: 1, 32>}, {pipeline_mode = #tpu.pipeline_mode<synchronous>, transform_indices = @transform_3, window_bounds = array<i64: 1, 32>}, {pipeline_mode = #tpu.pipeline_mode<synchronous>, transform_indices = @transform_4, window_bounds = array<i64: 1, 1>}, {transform_indices = @transform_5, window_bounds = array<i64: 1, 1, 8>}]} {
    %c0 = arith.constant 0 : index
    %c0_0 = arith.constant 0 : index
    %0 = vector.load %arg1[%c0, %c0_0] : memref<8x64xf32, #tpu.memory_space<vmem>>, vector<8x64xf32>
    %c0_1 = arith.constant 0 : index
    %c0_2 = arith.constant 0 : index
    %1 = vector.load %arg2[%c0_1, %c0_2] : memref<64x32xf32, #tpu.memory_space<vmem>>, vector<64x32xf32>
    %cst = arith.constant dense<0.000000e+00> : vector<8x32xf32>
    %2 = tpu.matmul %0, %1, %cst {dimension_numbers = #tpu.dot_dimension_numbers<[1], [0], [0], [1], [0, 0, 1, 1], [], []>} : vector<8x64xf32>, vector<64x32xf32>, vector<8x32xf32> -> vector<8x32xf32>
    %c0_3 = arith.constant 0 : index
    %c0_4 = arith.constant 0 : index
    %3 = vector.load %arg3[%c0_3, %c0_4] : memref<1x32xf32, #tpu.memory_space<vmem>>, vector<1x32xf32>
    %4 = vector.broadcast %3 : vector<1x32xf32> to vector<8x32xf32>
    %5 = arith.addf %2, %4 : vector<8x32xf32>
    %cst_5 = arith.constant 2.000000e-01 : f32
    %6 = vector.broadcast %cst_5 : f32 to vector<8x32xf32>
    %7 = arith.mulf %6, %5 : vector<8x32xf32>
    %8 = arith.maximumf %5, %7 : vector<8x32xf32>
    %c0_6 = arith.constant 0 : index
    %c0_7 = arith.constant 0 : index
    %9 = vector.load %arg4[%c0_6, %c0_7] : memref<1x32xf32, #tpu.memory_space<vmem>>, vector<1x32xf32>
    %cst_8 = arith.constant dense<0.000000e+00> : vector<1x8xf32>
    %10 = tpu.matmul %9, %8, %cst_8 {dimension_numbers = #tpu.dot_dimension_numbers<[1], [1], [0], [0], [0, 0, 1, 0], [], []>} : vector<1x32xf32>, vector<8x32xf32>, vector<1x8xf32> -> vector<1x8xf32>
    %c0_9 = arith.constant 0 : index
    %c0_10 = arith.constant 0 : index
    %11 = vector.load %arg5[%c0_9, %c0_10] : memref<1x1xf32, #tpu.memory_space<vmem>>, vector<1x1xf32>
    %12 = vector.broadcast %11 : vector<1x1xf32> to vector<1x8xf32>
    %13 = arith.addf %10, %12 : vector<1x8xf32>
    %14 = vector.shape_cast %13 : vector<1x8xf32> to vector<1x1x8xf32>
    %c0_11 = arith.constant 0 : index
    %c0_12 = arith.constant 0 : index
    %c0_13 = arith.constant 0 : index
    %15 = vector.load %arg6[%c0_11, %c0_12, %c0_13] : memref<1x1x8xf32, #tpu.memory_space<vmem>>, vector<1x1x8xf32>
    tpu.vector_store %arg6[%c0_11, %c0_12, %c0_13], %14 {strides = array<i32>} : memref<1x1x8xf32, #tpu.memory_space<vmem>>, vector<1x1x8xf32>,
    return
  }
  func.func @transform_0(%arg0: i32) -> (i32, i32) {
    %c0_i32 = arith.constant 0 : i32
    %c0_i32_0 = arith.constant 0 : i32
    return %arg0, %c0_i32 : i32, i32
  }
  func.func @transform_1(%arg0: i32) -> (i32, i32) {
    %c0_i32 = arith.constant 0 : i32
    %c0_i32_0 = arith.constant 0 : i32
    %c0_i32_1 = arith.constant 0 : i32
    return %c0_i32, %c0_i32_0 : i32, i32
  }
  func.func @transform_2(%arg0: i32) -> (i32, i32) {
    %c0_i32 = arith.constant 0 : i32
    %c0_i32_0 = arith.constant 0 : i32
    %c0_i32_1 = arith.constant 0 : i32
    return %c0_i32, %c0_i32_0 : i32, i32
  }
  func.func @transform_3(%arg0: i32) -> (i32, i32) {
    %c0_i32 = arith.constant 0 : i32
    %c0_i32_0 = arith.constant 0 : i32
    %c0_i32_1 = arith.constant 0 : i32
    return %c0_i32, %c0_i32_0 : i32, i32
  }
  func.func @transform_4(%arg0: i32) -> (i32, i32) {
    %c0_i32 = arith.constant 0 : i32
    %c0_i32_0 = arith.constant 0 : i32
    %c0_i32_1 = arith.constant 0 : i32
    return %c0_i32, %c0_i32_0 : i32, i32
  }
  func.func @transform_5(%arg0: i32) -> (i32, i32, i32) {
    %c0_i32 = arith.constant 0 : i32
    %c0_i32_0 = arith.constant 0 : i32
    %c0_i32_1 = arith.constant 0 : i32
    return %arg0, %c0_i32, %c0_i32_0 : i32, i32, i32
  }
}

</mosaic_0001>

<llo_original>
// kernel: tpu_custom_call.1
$region0: #{tpu_custom_call.1}
  #allocation0 [shape = 'u32[]', space=smem, size = 0x4, offset = 0x4, fixed_abs, tag = 'smem constant byte address 0x4 - core index']
  #allocation1 [shape = 'u32[72,128]{1,0:T(1,128)}', space=vmem, size = 0x9000, scoped, tag = 'internal scratch']
  #allocation2 [shape = 'f32[1,1]{1,0:T(1,128)S(1)}', space=vmem, size = 0x200, scoped, tag = 'scoped memory for tpu_custom_call.1']
  %s0 = inlined_call_operand.vmem [shape: f32[8,64], index: 0, kind: input, shape index: {}]
  %s1 = inlined_call_operand.vmem [shape: f32[64,32], index: 1, kind: input, shape index: {}]
  %s2 = inlined_call_operand.vmem [shape: f32[1,32], index: 2, kind: input, shape index: {}]
  %s3 = inlined_call_operand.vmem [shape: f32[1,32], index: 3, kind: input, shape index: {}]
  %s4 = inlined_call_operand.<no memory space> [shape: f32[1,1], index: 4, kind: input, shape index: {}]
  %s5 = inlined_call_operand.hbm [shape: f32[1,1,8], index: 5, kind: output, shape index: {}]
  %s6 = sld [smem:[#allocation0]]
  $region30: #{tpu_custom_call.1} parent=0
    _
  %s8 = ssub.s32 1, %s6
  %s9 = scalar_select 0, %s8, %s6
  %v10 = vstv %s4
  %11 = vst [vmem:[#allocation2] sm:$0x1] %v10
  $region1: #{tpu_custom_call.1} parent=0
    #allocation3 [shape = 'u8[512]{0}', space=vmem, size = 0x400, scoped, tag = 'output window, operand 0, single buffered']
    #allocation4 [shape = 's32[1]{0}', space=sflag, size = 0x4, scoped, tag = 'scoped memory for tpu_custom_call.1']
    %12 = vsyncpa [#allocation4], 0
    // Predicated region
    $region2: #{tpu_custom_call.1} parent=1 // pred_check
      _
    $region3: #{tpu_custom_call.1} parent=1 // pred_check_branch
      %14 = sbr.rel (0) target = $region5
    $region4: #{tpu_custom_call.1} parent=1 // pred_region
      _
    $region5: #{tpu_custom_call.1} parent=1 // pred_fallthru
      _
    // Predicated region
    $region6: #{tpu_custom_call.1} parent=1 // pred_check
      _
    $region7: #{tpu_custom_call.1} parent=1 // pred_check_branch
      %16 = sbr.rel (0) target = $region9
    $region8: #{tpu_custom_call.1} parent=1 // pred_region
      _
    $region9: #{tpu_custom_call.1} parent=1 // pred_fallthru
      _
    // Predicated region
    $region10: #{tpu_custom_call.1} parent=1 // pred_check
      _
    $region11: #{tpu_custom_call.1} parent=1 // pred_check_branch
      %18 = sbr.rel (0) target = $region13
    $region12: #{tpu_custom_call.1} parent=1 // pred_region
      _
    $region13: #{tpu_custom_call.1} parent=1 // pred_fallthru
      _
    // Predicated region
    $region14: #{tpu_custom_call.1} parent=1 // pred_check
      _
    $region15: #{tpu_custom_call.1} parent=1 // pred_check_branch
      %20 = sbr.rel (0) target = $region17
    $region16: #{tpu_custom_call.1} parent=1 // pred_region
      _
    $region17: #{tpu_custom_call.1} parent=1 // pred_fallthru
      _
    // Predicated region
    $region18: #{tpu_custom_call.1} parent=1 // pred_check
      _
    $region19: #{tpu_custom_call.1} parent=1 // pred_check_branch
      %22 = sbr.rel (0) target = $region21
    $region20: #{tpu_custom_call.1} parent=1 // pred_region
      _
    $region21: #{tpu_custom_call.1} parent=1 // pred_fallthru
      _
    %v23 = vld [vmem:[%s0] sm:$0xff]
    %v24 = vld [vmem:[%s1] sm:$0xff]
    %v25 = vld [vmem:[%s1 + $0x8] sm:$0xff]
    %v26 = vld [vmem:[%s1 + $0x10] sm:$0xff]
    %v27 = vld [vmem:[%s1 + $0x18] sm:$0xff]
    %v28 = vld [vmem:[%s1 + $0x20] sm:$0xff]
    %v29 = vld [vmem:[%s1 + $0x28] sm:$0xff]
    %v30 = vld [vmem:[%s1 + $0x30] sm:$0xff]
    %v31 = vld [vmem:[%s1 + $0x38] sm:$0xff]
    %v32 = vld [vmem:[%s2] sm:$0x1]
    %v34 = vperm.slane %v32, 0
    %vm36 = vcmask 523264
    %v38 = vsel %vm36, %v23, 0
    %40 = vmatpush.msra.mxu0 0.0
    %41 = vmatpush.msra.mxu0 0.0
    %42 = vmatpush.msra.mxu0 0.0
    %43 = vmatpush.msra.mxu0 0.0
    %44 = vmatpush.msra.mxu0 0.0
    %45 = vmatpush.msra.mxu0 0.0
    %46 = vmatpush.msra.mxu0 0.0
    %47 = vmatpush.msra.mxu0 0.0
    %48 = vmatpush.msra.mxu0 %v31
    %49 = vmatpush.msra.mxu0 %v30
    %50 = vmatpush.msra.mxu0 %v29
    %51 = vmatpush.msra.mxu0 %v28
    %52 = vmatpush.msra.mxu0 %v27
    %53 = vmatpush.msra.mxu0 %v26
    %54 = vmatpush.msra.mxu0 %v25
    %55 = vmatpush.msra.mxu0 %v24
    %56 = vmatmul.f32.gmra.mxu0 %v38
    %v57 = vpop.f32.mrf.mxu0
    %v58 = vadd.f32 %v34, %v57
    %59 = vdwg.mxu0
    %v60 = vmul.f32 %v58, 0.2
    %v61 = vmax.f32 %v58, %v60
    %v62 = vld [vmem:[%s3] sm:$0x1]
    %v63 = vld [vmem:[#allocation2] sm:$0x1]
    %65 = vset.pattern.permute.xlu0 0
    %66 = vperm.xlu0 %65, %v63
    %v67 = vpop.permute.xlu0 %66
    %v69 = vperm.slane %v67, 0
    %vm70 = vcmask 261120
    %v72 = vsel %vm70, %v62, 0
    %v75 = vsel %vm70, %v61, 0
    %77 = vmatpush.xpose.msra.mxu0 0.0
    %78 = vmatpush.xpose.msra.mxu0 0.0
    %79 = vmatpush.xpose.msra.mxu0 0.0
    %80 = vmatpush.xpose.msra.mxu0 0.0
    %81 = vmatpush.xpose.msra.mxu0 0.0
    %82 = vmatpush.xpose.msra.mxu0 0.0
    %83 = vmatpush.xpose.msra.mxu0 0.0
    %84 = vmatpush.xpose.msra.mxu0 0.0
    %85 = vmatpush.xpose.msra.mxu0 0.0
    %86 = vmatpush.xpose.msra.mxu0 0.0
    %87 = vmatpush.xpose.msra.mxu0 0.0
    %88 = vmatpush.xpose.msra.mxu0 0.0
    %89 = vmatpush.xpose.msra.mxu0 0.0
    %90 = vmatpush.xpose.msra.mxu0 0.0
    %91 = vmatpush.xpose.msra.mxu0 0.0
    %92 = vmatpush.xpose.msra.mxu0 %v75
    %93 = vmatmul.f32.gmra.mxu0 %v72
    %v94 = vpop.f32.mrf.mxu0
    %v95 = vadd.f32 %v69, %v94
    %96 = vdwg.mxu0
    %vm97 = vcmask 57344
    %98 = vst.msk [vmem:[#allocation3] sm:$0x1] %vm97, %v95
    // Predicated region
    $region22: #{tpu_custom_call.1} parent=1 // pred_check
      _
    $region23: #{tpu_custom_call.1} parent=1 // pred_check_branch
      %100 = sbr.rel (0) target = $region25
    $region24: #{tpu_custom_call.1} parent=1 // pred_region
      %102 = vsyncadd [#allocation4], 0
      %s104 = sshll.u32 [#allocation3], 4
      %s105 = int_to_ptr.vmem [resolvable:$true] %s104
      %s106 = sshll.u32 %s5, 4
      %s107 = int_to_ptr.hbm [resolvable:$true] %s106
      %109 = dma.vmem_to_hbm [thread:$0]  %s105, 16, %s107, [#allocation4]
    $region25: #{tpu_custom_call.1} parent=1 // pred_fallthru
      _
    // Predicated region
    $region26: #{tpu_custom_call.1} parent=1 // pred_check
      _
    $region27: #{tpu_custom_call.1} parent=1 // pred_check_branch
      %111 = sbr.rel (0) target = $region29
    $region28: #{tpu_custom_call.1} parent=1 // pred_region
      %113 = dma.done [#allocation4], 16
    $region29: #{tpu_custom_call.1} parent=1 // pred_fallthru
      _
    %114 = vsyncpa [#allocation4], 1

</llo_original>
